<compile_context>
chip_gen: v5e
topology: v5e:2x2
jax: 0.10.0
libtpu: 0.0.40
codegen_flags: <defaults>
</compile_context>

<pallas_src>
import functools

import jax
import jax.numpy as jnp
from jax.experimental import pallas as pl
from jax.experimental.pallas import tpu as pltpu

LANE = 128  # lane width: hidden dim padded to this once at init


def _round_up(n, m):
    return ((n + m - 1) // m) * m


def _cdiv(a, b):
    return (a + b - 1) // b


def mlp_kernel(x_ref, w1_ref, b1_ref, w2_ref, b2_ref, o_ref):
    # x:  (tb, obs) f32        w1: (obs, hidden_pad)       b1: (1, hidden_pad) f32
    # w2: (hidden_pad, act)    b2: (1, act) f32            o:  (tb, act) f32
    # Cast x inside the kernel (free on the VPU; avoids a wrapper-side XLA pass
    # when the weights are bf16). No-op for the f32 path.
    x = x_ref[...].astype(w1_ref.dtype)
    # Layer 1: MXU matmul with f32 accumulation, bias add + ReLU in f32 on VPU.
    h = jnp.dot(x, w1_ref[...], preferred_element_type=jnp.float32) + b1_ref[...]
    h = jnp.maximum(h, 0.0)
    # Layer 2: narrow (num_actions-wide) output -> small masked store, but far
    # less HBM writeback than a 128-wide padded slab at large batch.
    y = jnp.dot(h.astype(w2_ref.dtype), w2_ref[...],
                preferred_element_type=jnp.float32) + b2_ref[...]
    o_ref[...] = y.astype(o_ref.dtype)


def prepare_params(w1, b1, w2, b2, compute_dtype=jnp.float32):
    """One-time parameter preprocessing (hoisted out of the per-step path).

    w1: (hidden, obs_size), b1: (hidden,)        -- PyTorch (out, in) layout
    w2: (num_actions, hidden), b2: (num_actions,)

    Returns kernel-layout params:
      w1_t (obs, hidden_pad), b1 (1, hidden_pad) f32,
      w2_t (hidden_pad, num_actions), b2 (1, num_actions) f32,
    with hidden_pad a multiple of 128 (zero-padded -> bit-identical output,
    since ReLU(0)=0 and zero rows of w2 contribute nothing).
    """
    hidden, obs = w1.shape
    num_actions = w2.shape[0]
    hidden_pad = _round_up(hidden, LANE)

    w1_t = jnp.asarray(w1, jnp.float32).T                        # (obs, hidden)
    w1_t = jnp.pad(w1_t, ((0, 0), (0, hidden_pad - hidden)))
    w1_t = w1_t.astype(compute_dtype)
    b1_2d = jnp.asarray(b1, jnp.float32).reshape(1, hidden)      # bias stays f32
    b1_2d = jnp.pad(b1_2d, ((0, 0), (0, hidden_pad - hidden)))

    w2_t = jnp.asarray(w2, jnp.float32).T                        # (hidden, act)
    w2_t = jnp.pad(w2_t, ((0, hidden_pad - hidden), (0, 0)))
    w2_t = w2_t.astype(compute_dtype)
    b2_2d = jnp.asarray(b2, jnp.float32).reshape(1, num_actions)

    return (w1_t, b1_2d, w2_t, b2_2d), num_actions


def net_forward(x, params, num_actions, *, block_batch=4096, min_split_rows=256,
                small_batch_fallback=None):
    """Forward pass of Net. x: (B, obs_size) f32. Returns (B, num_actions) f32."""
    w1_t, b1_2d, w2_t, b2_2d = params
    B, obs = x.shape
    hidden_pad = w1_t.shape[1]

    # Small-batch fast path: at CartPole rollout sizes the pallas_call is pure
    # launch overhead; callers can set a threshold (e.g. 256) to skip it.
    if small_batch_fallback is not None and B < small_batch_fallback:
        h = jnp.maximum(
            jnp.dot(x.astype(w1_t.dtype), w1_t,
                    preferred_element_type=jnp.float32) + b1_2d, 0.0)
        y = jnp.dot(h.astype(w2_t.dtype), w2_t,
                    preferred_element_type=jnp.float32) + b2_2d
        return y

    # Sublane alignment: 16 is required only for non-full bf16 tiles, but it is
    # harmless to use it whenever the compute dtype is bf16 (future-proof).
    sublane = 16 if w1_t.dtype == jnp.bfloat16 else 8
    b_aligned = _round_up(B, sublane)

    # Balanced batch tiling with minimal tail padding.
    n_tiles = _cdiv(b_aligned, block_batch)
    # Ensure >= 2 tiles for moderately large batches so the "parallel" grid
    # axis can be split across both v7x TensorCores (no-op on v5e/v6e).
    if b_aligned >= 2 * min_split_rows:
        n_tiles = max(n_tiles, 2)
    tb = _round_up(_cdiv(b_aligned, n_tiles), sublane)
    b_pad = n_tiles * tb                       # pads at most ~n_tiles*sublane rows
    if b_pad != B:
        x = jnp.pad(x, ((0, b_pad - B), (0, 0)))

    out = pl.pallas_call(
        mlp_kernel,
        out_shape=jax.ShapeDtypeStruct((b_pad, num_actions), jnp.float32),
        grid=(n_tiles,),
        in_specs=[
            # Batch-tiled activations (double-buffered across grid steps).
            pl.BlockSpec((tb, obs), lambda i: (i, 0)),
            # Weights / biases: constant index_map -> VMEM-resident, no re-DMA.
            pl.BlockSpec((obs, hidden_pad), lambda i: (0, 0)),
            pl.BlockSpec((1, hidden_pad), lambda i: (0, 0)),
            pl.BlockSpec((hidden_pad, num_actions), lambda i: (0, 0)),
            pl.BlockSpec((1, num_actions), lambda i: (0, 0)),
        ],
        out_specs=pl.BlockSpec((tb, num_actions), lambda i: (i, 0)),
        compiler_params=pltpu.CompilerParams(
            # Independent batch tiles -> megacore sharding on v7x (2 TCs).
            dimension_semantics=("parallel",),
            # Headroom under v7x's 64 MiB VMEM (also fine on v5e/v6e).
            vmem_limit_bytes=48 * 1024 * 1024,
        ),
    )(x, w1_t, b1_2d, w2_t, b2_2d)

    return out[:B] if b_pad != B else out


def _reference(x, w1, b1, w2, b2):
    return jnp.maximum(x @ w1.T + b1, 0.0) @ w2.T + b2


if __name__ == "__main__":
    # CartPole-like sizes: obs_size=4, hidden=32, num_actions=2.
    obs_size, hidden, num_actions = 4, 32, 2

    key = jax.random.PRNGKey(0)
    k_x, k_w1, k_b1, k_w2, k_b2, k_x2 = jax.random.split(key, 6)

    # Deterministic init mimicking PyTorch Linear's uniform(-1/sqrt(in), 1/sqrt(in)).
    bound1 = 1.0 / (obs_size ** 0.5)
    w1 = jax.random.uniform(k_w1, (hidden, obs_size), minval=-bound1, maxval=bound1)
    b1 = jax.random.uniform(k_b1, (hidden,), minval=-bound1, maxval=bound1)
    bound2 = 1.0 / (hidden ** 0.5)
    w2 = jax.random.uniform(k_w2, (num_actions, hidden), minval=-bound2, maxval=bound2)
    b2 = jax.random.uniform(k_b2, (num_actions,), minval=-bound2, maxval=bound2)

    # One-time param prep (f32 compute here; pass jnp.bfloat16 for big nets).
    params, n_act = prepare_params(w1, b1, w2, b2, compute_dtype=jnp.float32)

    # Case 1: tiny batch (single tile).
    x = jax.random.normal(k_x, (8, obs_size), dtype=jnp.float32)
    out = net_forward(x, params, n_act)
    jax.block_until_ready(out)
    ref = _reference(x, w1, b1, w2, b2)
    assert out.shape == (8, num_actions)
    assert jnp.allclose(out, ref, atol=1e-5, rtol=1e-5)

    # Case 2: batch that exercises multi-tile grid + balanced tail padding.
    x2 = jax.random.normal(k_x2, (300, obs_size), dtype=jnp.float32)
    out2 = net_forward(x2, params, n_act, block_batch=128, min_split_rows=64)
    jax.block_until_ready(out2)
    ref2 = _reference(x2, w1, b1, w2, b2)
    assert out2.shape == (300, num_actions)
    assert jnp.allclose(out2, ref2, atol=1e-5, rtol=1e-5)

    print("KERNEL_OK")
</pallas_src>

<mosaic_0001>
module attributes {stable_mosaic.version = 11 : i64} {
  func.func @mlp_kernel(%arg0: i32, %arg1: memref<8x4xf32, #tpu.memory_space<vmem>>, %arg2: memref<4x128xf32, #tpu.memory_space<vmem>>, %arg3: memref<1x128xf32, #tpu.memory_space<vmem>>, %arg4: memref<128x2xf32, #tpu.memory_space<vmem>>, %arg5: memref<1x2xf32, #tpu.memory_space<vmem>>, %arg6: memref<8x2xf32, #tpu.memory_space<vmem>>) attributes {dimension_semantics = [#tpu.dimension_semantics<parallel>], iteration_bounds = array<i64: 1>, scalar_prefetch = 0 : i64, scratch_operands = 0 : i64, tpu.core_type = #tpu.core_type<tc>, window_params = [{transform_indices = @transform_0, window_bounds = array<i64: 8, 4>}, {pipeline_mode = #tpu.pipeline_mode<synchronous>, transform_indices = @transform_1, window_bounds = array<i64: 4, 128>}, {pipeline_mode = #tpu.pipeline_mode<synchronous>, transform_indices = @transform_2, window_bounds = array<i64: 1, 128>}, {pipeline_mode = #tpu.pipeline_mode<synchronous>, transform_indices = @transform_3, window_bounds = array<i64: 128, 2>}, {pipeline_mode = #tpu.pipeline_mode<synchronous>, transform_indices = @transform_4, window_bounds = array<i64: 1, 2>}, {transform_indices = @transform_5, window_bounds = array<i64: 8, 2>}]} {
    %c0 = arith.constant 0 : index
    %c0_0 = arith.constant 0 : index
    %0 = vector.load %arg1[%c0, %c0_0] : memref<8x4xf32, #tpu.memory_space<vmem>>, vector<8x4xf32>
    %c0_1 = arith.constant 0 : index
    %c0_2 = arith.constant 0 : index
    %1 = vector.load %arg2[%c0_1, %c0_2] : memref<4x128xf32, #tpu.memory_space<vmem>>, vector<4x128xf32>
    %cst = arith.constant dense<0.000000e+00> : vector<8x128xf32>
    %2 = tpu.matmul %0, %1, %cst {dimension_numbers = #tpu.dot_dimension_numbers<[1], [0], [0], [1], [0, 0, 1, 1], [], []>} : vector<8x4xf32>, vector<4x128xf32>, vector<8x128xf32> -> vector<8x128xf32>
    %c0_3 = arith.constant 0 : index
    %c0_4 = arith.constant 0 : index
    %3 = vector.load %arg3[%c0_3, %c0_4] : memref<1x128xf32, #tpu.memory_space<vmem>>, vector<1x128xf32>
    %4 = vector.broadcast %3 : vector<1x128xf32> to vector<8x128xf32>
    %5 = arith.addf %2, %4 : vector<8x128xf32>
    %cst_5 = arith.constant 0.000000e+00 : f32
    %6 = vector.broadcast %cst_5 : f32 to vector<8x128xf32>
    %7 = arith.maximumf %5, %6 : vector<8x128xf32>
    %c0_6 = arith.constant 0 : index
    %c0_7 = arith.constant 0 : index
    %8 = vector.load %arg4[%c0_6, %c0_7] : memref<128x2xf32, #tpu.memory_space<vmem>>, vector<128x2xf32>
    %cst_8 = arith.constant dense<0.000000e+00> : vector<8x2xf32>
    %9 = tpu.matmul %7, %8, %cst_8 {dimension_numbers = #tpu.dot_dimension_numbers<[1], [0], [0], [1], [0, 0, 1, 1], [], []>} : vector<8x128xf32>, vector<128x2xf32>, vector<8x2xf32> -> vector<8x2xf32>
    %c0_9 = arith.constant 0 : index
    %c0_10 = arith.constant 0 : index
    %10 = vector.load %arg5[%c0_9, %c0_10] : memref<1x2xf32, #tpu.memory_space<vmem>>, vector<1x2xf32>
    %11 = vector.broadcast %10 : vector<1x2xf32> to vector<8x2xf32>
    %12 = arith.addf %9, %11 : vector<8x2xf32>
    %c0_11 = arith.constant 0 : index
    %c0_12 = arith.constant 0 : index
    %13 = vector.load %arg6[%c0_11, %c0_12] : memref<8x2xf32, #tpu.memory_space<vmem>>, vector<8x2xf32>
    tpu.vector_store %arg6[%c0_11, %c0_12], %12 {strides = array<i32>} : memref<8x2xf32, #tpu.memory_space<vmem>>, vector<8x2xf32>,
    return
  }
  func.func @transform_0(%arg0: i32) -> (i32, i32) {
    %c0_i32 = arith.constant 0 : i32
    %c0_i32_0 = arith.constant 0 : i32
    return %arg0, %c0_i32 : i32, i32
  }
  func.func @transform_1(%arg0: i32) -> (i32, i32) {
    %c0_i32 = arith.constant 0 : i32
    %c0_i32_0 = arith.constant 0 : i32
    %c0_i32_1 = arith.constant 0 : i32
    return %c0_i32, %c0_i32_0 : i32, i32
  }
  func.func @transform_2(%arg0: i32) -> (i32, i32) {
    %c0_i32 = arith.constant 0 : i32
    %c0_i32_0 = arith.constant 0 : i32
    %c0_i32_1 = arith.constant 0 : i32
    return %c0_i32, %c0_i32_0 : i32, i32
  }
  func.func @transform_3(%arg0: i32) -> (i32, i32) {
    %c0_i32 = arith.constant 0 : i32
    %c0_i32_0 = arith.constant 0 : i32
    %c0_i32_1 = arith.constant 0 : i32
    return %c0_i32, %c0_i32_0 : i32, i32
  }
  func.func @transform_4(%arg0: i32) -> (i32, i32) {
    %c0_i32 = arith.constant 0 : i32
    %c0_i32_0 = arith.constant 0 : i32
    %c0_i32_1 = arith.constant 0 : i32
    return %c0_i32, %c0_i32_0 : i32, i32
  }
  func.func @transform_5(%arg0: i32) -> (i32, i32) {
    %c0_i32 = arith.constant 0 : i32
    %c0_i32_0 = arith.constant 0 : i32
    return %arg0, %c0_i32 : i32, i32
  }
}

</mosaic_0001>

<llo_original>
// kernel: tpu_custom_call.1
$region0: #{tpu_custom_call.1}
  #allocation0 [shape = 'u32[]', space=smem, size = 0x4, offset = 0x4, fixed_abs, tag = 'smem constant byte address 0x4 - core index']
  #allocation1 [shape = 'u32[72,128]{1,0:T(1,128)}', space=vmem, size = 0x9000, scoped, tag = 'internal scratch']
  %s0 = inlined_call_operand.vmem [shape: f32[8,4], index: 0, kind: input, shape index: {}]
  %s1 = inlined_call_operand.vmem [shape: f32[4,128], index: 1, kind: input, shape index: {}]
  %s2 = inlined_call_operand.vmem [shape: f32[1,128], index: 2, kind: input, shape index: {}]
  %s3 = inlined_call_operand.vmem [shape: f32[128,2], index: 3, kind: input, shape index: {}]
  %s4 = inlined_call_operand.vmem [shape: f32[1,2], index: 4, kind: input, shape index: {}]
  %s5 = inlined_call_operand.vmem [shape: f32[8,2], index: 5, kind: output, shape index: {}]
  %s6 = sld [smem:[#allocation0]]
  $region30: #{tpu_custom_call.1} parent=0
    _
  %s8 = ssub.s32 1, %s6
  %s9 = scalar_select 0, %s8, %s6
  // Predicated region
  $region2: #{tpu_custom_call.1} parent=0 // pred_check
    _
  $region3: #{tpu_custom_call.1} parent=0 // pred_check_branch
    %11 = sbr.rel (0) target = $region5
  $region4: #{tpu_custom_call.1} parent=0 // pred_region
    _
  $region5: #{tpu_custom_call.1} parent=0 // pred_fallthru
    _
  // Predicated region
  $region6: #{tpu_custom_call.1} parent=0 // pred_check
    _
  $region7: #{tpu_custom_call.1} parent=0 // pred_check_branch
    %13 = sbr.rel (0) target = $region9
  $region8: #{tpu_custom_call.1} parent=0 // pred_region
    _
  $region9: #{tpu_custom_call.1} parent=0 // pred_fallthru
    _
  // Predicated region
  $region10: #{tpu_custom_call.1} parent=0 // pred_check
    _
  $region11: #{tpu_custom_call.1} parent=0 // pred_check_branch
    %15 = sbr.rel (0) target = $region13
  $region12: #{tpu_custom_call.1} parent=0 // pred_region
    _
  $region13: #{tpu_custom_call.1} parent=0 // pred_fallthru
    _
  // Predicated region
  $region14: #{tpu_custom_call.1} parent=0 // pred_check
    _
  $region15: #{tpu_custom_call.1} parent=0 // pred_check_branch
    %17 = sbr.rel (0) target = $region17
  $region16: #{tpu_custom_call.1} parent=0 // pred_region
    _
  $region17: #{tpu_custom_call.1} parent=0 // pred_fallthru
    _
  // Predicated region
  $region18: #{tpu_custom_call.1} parent=0 // pred_check
    _
  $region19: #{tpu_custom_call.1} parent=0 // pred_check_branch
    %19 = sbr.rel (0) target = $region21
  $region20: #{tpu_custom_call.1} parent=0 // pred_region
    _
  $region21: #{tpu_custom_call.1} parent=0 // pred_fallthru
    _
  %v20 = vld [vmem:[%s0] sm:$0xff]
  %v21 = vld [vmem:[%s1] sm:$0xf]
  %v22 = vld [vmem:[%s2] sm:$0x1]
  %v24 = vperm.slane %v22, 0
  %vm26 = vcmask 31744
  %v28 = vsel %vm26, %v20, 0
  %vm30 = vcmask 1043456
  %v32 = vsel %vm30, %v21, 0
  %34 = vmatpush.msra.mxu0 0.0
  %35 = vmatpush.msra.mxu0 0.0
  %36 = vmatpush.msra.mxu0 0.0
  %37 = vmatpush.msra.mxu0 0.0
  %38 = vmatpush.msra.mxu0 0.0
  %39 = vmatpush.msra.mxu0 0.0
  %40 = vmatpush.msra.mxu0 0.0
  %41 = vmatpush.msra.mxu0 0.0
  %42 = vmatpush.msra.mxu0 0.0
  %43 = vmatpush.msra.mxu0 0.0
  %44 = vmatpush.msra.mxu0 0.0
  %45 = vmatpush.msra.mxu0 0.0
  %46 = vmatpush.msra.mxu0 0.0
  %47 = vmatpush.msra.mxu0 0.0
  %48 = vmatpush.msra.mxu0 0.0
  %49 = vmatpush.msra.mxu0 %v32
  %50 = vmatmul.f32.gmra.mxu0 %v28
  %v51 = vpop.f32.mrf.mxu0
  %v52 = vadd.f32 %v24, %v51
  %53 = vdwg.mxu0
  %v54 = vmax.f32 %v52, 0.0
  %v55 = vld [vmem:[%s3] sm:$0xff]
  %v56 = vld [vmem:[%s3 + $0x8] sm:$0xff]
  %v57 = vld [vmem:[%s3 + $0x10] sm:$0xff]
  %v58 = vld [vmem:[%s3 + $0x18] sm:$0xff]
  %v59 = vld [vmem:[%s3 + $0x20] sm:$0xff]
  %v60 = vld [vmem:[%s3 + $0x28] sm:$0xff]
  %v61 = vld [vmem:[%s3 + $0x30] sm:$0xff]
  %v62 = vld [vmem:[%s3 + $0x38] sm:$0xff]
  %v63 = vld [vmem:[%s3 + $0x40] sm:$0xff]
  %v64 = vld [vmem:[%s3 + $0x48] sm:$0xff]
  %v65 = vld [vmem:[%s3 + $0x50] sm:$0xff]
  %v66 = vld [vmem:[%s3 + $0x58] sm:$0xff]
  %v67 = vld [vmem:[%s3 + $0x60] sm:$0xff]
  %v68 = vld [vmem:[%s3 + $0x68] sm:$0xff]
  %v69 = vld [vmem:[%s3 + $0x70] sm:$0xff]
  %v70 = vld [vmem:[%s3 + $0x78] sm:$0xff]
  %v71 = vld [vmem:[%s4] sm:$0x1]
  %v73 = vperm.slane %v71, 0
  %75 = vmatpush.msra.mxu0 %v70
  %76 = vmatpush.msra.mxu0 %v69
  %77 = vmatpush.msra.mxu0 %v68
  %78 = vmatpush.msra.mxu0 %v67
  %79 = vmatpush.msra.mxu0 %v66
  %80 = vmatpush.msra.mxu0 %v65
  %81 = vmatpush.msra.mxu0 %v64
  %82 = vmatpush.msra.mxu0 %v63
  %83 = vmatpush.msra.mxu0 %v62
  %84 = vmatpush.msra.mxu0 %v61
  %85 = vmatpush.msra.mxu0 %v60
  %86 = vmatpush.msra.mxu0 %v59
  %87 = vmatpush.msra.mxu0 %v58
  %88 = vmatpush.msra.mxu0 %v57
  %89 = vmatpush.msra.mxu0 %v56
  %90 = vmatpush.msra.mxu0 %v55
  %91 = vmatmul.f32.gmra.mxu0 %v54
  %v92 = vpop.f32.mrf.mxu0
  %v93 = vadd.f32 %v73, %v92
  %94 = vdwg.mxu0
  %vm95 = vcmask 15360
  %96 = vst.msk [vmem:[%s5] sm:$0xff] %vm95, %v93
  // Predicated region
  $region22: #{tpu_custom_call.1} parent=0 // pred_check
    _
  $region23: #{tpu_custom_call.1} parent=0 // pred_check_branch
    %98 = sbr.rel (0) target = $region25
  $region24: #{tpu_custom_call.1} parent=0 // pred_region
    _
  $region25: #{tpu_custom_call.1} parent=0 // pred_fallthru
    _
  // Predicated region
  $region26: #{tpu_custom_call.1} parent=0 // pred_check
    _
  $region27: #{tpu_custom_call.1} parent=0 // pred_check_branch
    %100 = sbr.rel (0) target = $region29
  $region28: #{tpu_custom_call.1} parent=0 // pred_region
    _
  $region29: #{tpu_custom_call.1} parent=0 // pred_fallthru
    _

</llo_original>
